<compile_context>
chip_gen: v7x
topology: tpu7x:2x2x1
jax: 0.10.0
libtpu: 0.0.40
codegen_flags: <defaults>
</compile_context>

<pallas_src>
import functools

import jax
import jax.numpy as jnp
from jax.experimental import pallas as pl
from jax.experimental.pallas import tpu as pltpu


def _addcoords_kernel(x_ref, o_ref, *, C, X, Y, xyt, with_r):
    """One (bt, C, xyt) input block -> (bt, C+extra, xyt) output block."""
    Bt = o_ref.shape[0]
    extra = o_ref.shape[1] - C

    # 1) Pass-through copy of the original channels (lane-dense stores).
    o_ref[:, :C, :] = x_ref[...]

    # 2) Coordinate channels for this spatial tile only (batch-invariant).
    #    Flat spatial index f = i * Y + j is recovered exactly with int32 math:
    #    a float32 quotient estimate (error < 1 for any realistic X) followed
    #    by an integer off-by-one correction.  Pure VPU work; sqrt -> EUP slot.
    flat0 = pl.program_id(1) * xyt
    f = jax.lax.broadcasted_iota(jnp.int32, (1, xyt), 1) + flat0
    row_est = jnp.floor(f.astype(jnp.float32) * (1.0 / float(Y))).astype(jnp.int32)
    rem = f - row_est * Y
    row_i = row_est + (rem >= Y).astype(jnp.int32) - (rem < 0).astype(jnp.int32)
    col_i = f - row_i * Y
    row = row_i.astype(jnp.float32)      # i, varies along the X axis
    col = col_i.astype(jnp.float32)      # j, varies along the Y axis

    # Same op order as the reference: idx / (dim - 1) * 2 - 1.
    xx = col / (Y - 1) * 2.0 - 1.0
    yy = row / (X - 1) * 2.0 - 1.0
    chans = [xx, yy]
    if with_r:
        chans.append(jnp.sqrt(xx * xx + yy * yy))

    # Single fused store of all coordinate channels.
    coords = jnp.concatenate(chans, axis=0).astype(o_ref.dtype)   # (extra, xyt)
    o_ref[:, C:, :] = jnp.broadcast_to(coords[None], (Bt, extra, xyt))


def _round_up(n, m):
    return (n + m - 1) // m * m


def _largest_divisor_leq(n, cap):
    cap = max(1, min(cap, n))
    for d in range(cap, 0, -1):
        if n % d == 0:
            return d
    return 1


def _vmem_budget():
    """Return (vmem_limit_bytes, target combined in+out block bytes)."""
    try:
        cap = int(pltpu.get_tpu_info().vmem_capacity_bytes)
    except Exception:
        cap = 128 * 1024 * 1024                      # v5e/v6e-sized fallback
    vmem_limit = min(cap // 2, 64 * 1024 * 1024)     # 32 MiB on v7x, 64 MiB else
    # Double-buffered (2x in-block + 2x out-block) stays at ~half the limit,
    # i.e. ~4 MiB output blocks on v7x, ~8 MiB on v5e/v6e.
    return vmem_limit, vmem_limit // 4


def _choose_tiles(B, C, extra, XY, dtype, target_block_bytes):
    """Pick (batch_tile, spatial_tile) giving ~target-sized (in+out) blocks."""
    itemsize = jnp.dtype(dtype).itemsize
    sublane = max(8, 32 // itemsize)     # channel dim pads to 8 (f32) / 16 (bf16)
    # Sublane-padded bytes of one input+output block column, per batch index
    # and spatial element.
    per_elem = (_round_up(C, sublane) + _round_up(C + extra, sublane)) * itemsize
    per_batch = XY * per_elem

    if per_batch <= target_block_bytes:
        # Whole flattened spatial map per block; tile the batch dimension so a
        # block is ~target-sized (typical CoordConv: large B, small H*W).
        bt = _largest_divisor_leq(B, target_block_bytes // per_batch)
        xyt = XY
    else:
        # One batch element per block; lane-dense multiple-of-128 spatial tile.
        # The ragged tail block (if any) is masked by the cdiv grid.
        bt = 1
        xyt = max(128, (target_block_bytes // per_elem) // 128 * 128)
        if xyt >= XY:
            # TODO(synk): pathological huge-C / tiny-XY shapes would need an
            # extra channel-tile grid axis to bound VMEM further.
            xyt = XY

    # Guarantee >= 2 grid programs when splittable so both v7x TensorCores get
    # work (costs one extra ~0.35 us step on single-TC v5e/v6e: negligible).
    if (B // bt) * pl.cdiv(XY, xyt) == 1:
        if B > 1:
            bt = _largest_divisor_leq(B, B // 2)
        elif XY % 256 == 0:
            xyt = XY // 2
    return bt, xyt


def add_coords(x: jax.Array, *, with_r: bool = False, _force_tiles=None) -> jax.Array:
    """Pallas implementation of AddCoords.forward for NCHW input."""
    B, C, X, Y = x.shape
    extra = 3 if with_r else 2
    XY = X * Y

    vmem_limit, target = _vmem_budget()
    if _force_tiles is not None:         # test hook: (batch_tile, spatial_tile)
        bt, xyt = _force_tiles
    else:
        bt, xyt = _choose_tiles(B, C, extra, XY, x.dtype, target)
    grid = (B // bt, pl.cdiv(XY, xyt))

    kernel = functools.partial(
        _addcoords_kernel, C=C, X=X, Y=Y, xyt=xyt, with_r=with_r)

    x_flat = x.reshape(B, C, XY)         # lane-dense layout; free metadata reshape
    out_flat = pl.pallas_call(
        kernel,
        out_shape=jax.ShapeDtypeStruct((B, C + extra, XY), x.dtype),
        grid=grid,
        in_specs=[pl.BlockSpec((bt, C, xyt), lambda b, t: (b, 0, t))],
        out_specs=pl.BlockSpec((bt, C + extra, xyt), lambda b, t: (b, 0, t)),
        compiler_params=pltpu.CompilerParams(
            dimension_semantics=("parallel", "parallel"),
            vmem_limit_bytes=int(vmem_limit),
        ),
    )(x_flat)
    return out_flat.reshape(B, C + extra, X, Y)


def _reference_add_coords(x: jnp.ndarray, with_r: bool = False) -> jnp.ndarray:
    """Pure-JAX reference mirroring the PyTorch code (for correctness check)."""
    B, C, X, Y = x.shape
    xx_ones = jnp.ones((B, X, 1), jnp.float32)
    xx_range = jnp.tile(jnp.arange(Y, dtype=jnp.float32)[None, :], (B, 1))[:, None, :]
    xx_channel = jnp.matmul(xx_ones, xx_range)[:, None]          # (B,1,X,Y)
    yy_ones = jnp.ones((B, 1, Y), jnp.float32)
    yy_range = jnp.tile(jnp.arange(X, dtype=jnp.float32)[None, :], (B, 1))[:, :, None]
    yy_channel = jnp.matmul(yy_range, yy_ones)[:, None]          # (B,1,X,Y)
    xx_channel = xx_channel / (Y - 1) * 2 - 1
    yy_channel = yy_channel / (X - 1) * 2 - 1
    parts = [x, xx_channel.astype(x.dtype), yy_channel.astype(x.dtype)]
    if with_r:
        rr = jnp.sqrt(xx_channel ** 2 + yy_channel ** 2)
        parts.append(rr.astype(x.dtype))
    return jnp.concatenate(parts, axis=1)


if __name__ == "__main__":
    key = jax.random.PRNGKey(0)
    B, C, X, Y = 2, 4, 16, 16
    x = jax.random.normal(key, (B, C, X, Y), dtype=jnp.float32)

    out = jax.block_until_ready(add_coords(x, with_r=False))
    ref = _reference_add_coords(x, with_r=False)
    assert out.shape == (B, C + 2, X, Y), out.shape
    assert jnp.allclose(out, ref, atol=1e-6, rtol=1e-6), "mismatch vs reference"

    # with_r=True path.
    out_r = jax.block_until_ready(add_coords(x, with_r=True))
    ref_r = _reference_add_coords(x, with_r=True)
    assert out_r.shape == (B, C + 3, X, Y), out_r.shape
    assert jnp.allclose(out_r, ref_r, atol=1e-6, rtol=1e-6), "mismatch (with_r)"

    # Larger spatial map: exercises the batch-tiled / >=2-program path.
    x_big = jax.random.normal(key, (2, 16, 64, 64), dtype=jnp.float32)
    out_big = jax.block_until_ready(add_coords(x_big, with_r=True))
    ref_big = _reference_add_coords(x_big, with_r=True)
    assert jnp.allclose(out_big, ref_big, atol=1e-6, rtol=1e-6), "mismatch (big)"

    # Forced spatial tiling with a ragged tail (XY=1440, tile=512): exercises
    # the cdiv grid masking and the per-tile integer div/mod coordinate math.
    x_rag = jax.random.normal(key, (2, 4, 36, 40), dtype=jnp.float32)
    out_rag = jax.block_until_ready(
        add_coords(x_rag, with_r=True, _force_tiles=(1, 512)))
    ref_rag = _reference_add_coords(x_rag, with_r=True)
    assert jnp.allclose(out_rag, ref_rag, atol=1e-6, rtol=1e-6), "mismatch (ragged)"

    print("KERNEL_OK")
</pallas_src>

<mosaic_0001>
module attributes {stable_mosaic.version = 11 : i64} {
  func.func @_addcoords_kernel(%arg0: i32, %arg1: i32, %arg2: memref<1x4x256xf32, #tpu.memory_space<vmem>>, %arg3: memref<1x6x256xf32, #tpu.memory_space<vmem>>) attributes {dimension_semantics = [#tpu.dimension_semantics<parallel>, #tpu.dimension_semantics<parallel>], iteration_bounds = array<i64: 2, 1>, scalar_prefetch = 0 : i64, scratch_operands = 0 : i64, tpu.core_type = #tpu.core_type<tc>, window_params = [{transform_indices = @transform_0, window_bounds = array<i64: 1, 4, 256>}, {transform_indices = @transform_1, window_bounds = array<i64: 1, 6, 256>}]} {
    %c0 = arith.constant 0 : index
    %c0_0 = arith.constant 0 : index
    %c0_1 = arith.constant 0 : index
    %0 = vector.load %arg2[%c0, %c0_0, %c0_1] : memref<1x4x256xf32, #tpu.memory_space<vmem>>, vector<1x4x256xf32>
    %c0_2 = arith.constant 0 : index
    %c0_3 = arith.constant 0 : index
    %c0_4 = arith.constant 0 : index
    %1 = vector.load %arg3[%c0_2, %c0_3, %c0_4] : memref<1x6x256xf32, #tpu.memory_space<vmem>>, vector<1x4x256xf32>
    tpu.vector_store %arg3[%c0_2, %c0_3, %c0_4], %0 {strides = array<i32>} : memref<1x6x256xf32, #tpu.memory_space<vmem>>, vector<1x4x256xf32>,
    %c256_i32 = arith.constant 256 : i32
    %2 = arith.muli %arg1, %c256_i32 : i32
    %3 = tpu.iota {dimensions = array<i32: 1>} : vector<1x256xi32>
    %4 = vector.broadcast %2 : i32 to vector<1x256xi32>
    %5 = arith.addi %3, %4 : vector<1x256xi32>
    %6 = arith.sitofp %5 : vector<1x256xi32> to vector<1x256xf32>
    %cst = arith.constant 6.250000e-02 : f32
    %7 = vector.broadcast %cst : f32 to vector<1x256xf32>
    %8 = arith.mulf %6, %7 : vector<1x256xf32>
    %9 = math.floor %8 : vector<1x256xf32>
    %10 = arith.fptosi %9 : vector<1x256xf32> to vector<1x256xi32>
    %c16_i32 = arith.constant 16 : i32
    %11 = vector.broadcast %c16_i32 : i32 to vector<1x256xi32>
    %12 = arith.muli %10, %11 : vector<1x256xi32>
    %13 = arith.subi %5, %12 : vector<1x256xi32>
    %c16_i32_5 = arith.constant 16 : i32
    %14 = vector.broadcast %c16_i32_5 : i32 to vector<1x256xi32>
    %15 = arith.cmpi sge, %13, %14 : vector<1x256xi32>
    %16 = arith.extui %15 : vector<1x256xi1> to vector<1x256xi32>
    %17 = arith.addi %10, %16 : vector<1x256xi32>
    %c0_i32 = arith.constant 0 : i32
    %18 = vector.broadcast %c0_i32 : i32 to vector<1x256xi32>
    %19 = arith.cmpi slt, %13, %18 : vector<1x256xi32>
    %20 = arith.extui %19 : vector<1x256xi1> to vector<1x256xi32>
    %21 = arith.subi %17, %20 : vector<1x256xi32>
    %c16_i32_6 = arith.constant 16 : i32
    %22 = vector.broadcast %c16_i32_6 : i32 to vector<1x256xi32>
    %23 = arith.muli %21, %22 : vector<1x256xi32>
    %24 = arith.subi %5, %23 : vector<1x256xi32>
    %25 = arith.sitofp %21 : vector<1x256xi32> to vector<1x256xf32>
    %26 = arith.sitofp %24 : vector<1x256xi32> to vector<1x256xf32>
    %cst_7 = arith.constant 1.500000e+01 : f32
    %27 = vector.broadcast %cst_7 : f32 to vector<1x256xf32>
    %28 = arith.divf %26, %27 : vector<1x256xf32>
    %cst_8 = arith.constant 2.000000e+00 : f32
    %29 = vector.broadcast %cst_8 : f32 to vector<1x256xf32>
    %30 = arith.mulf %28, %29 : vector<1x256xf32>
    %cst_9 = arith.constant 1.000000e+00 : f32
    %31 = vector.broadcast %cst_9 : f32 to vector<1x256xf32>
    %32 = arith.subf %30, %31 : vector<1x256xf32>
    %cst_10 = arith.constant 1.500000e+01 : f32
    %33 = vector.broadcast %cst_10 : f32 to vector<1x256xf32>
    %34 = arith.divf %25, %33 : vector<1x256xf32>
    %cst_11 = arith.constant 2.000000e+00 : f32
    %35 = vector.broadcast %cst_11 : f32 to vector<1x256xf32>
    %36 = arith.mulf %34, %35 : vector<1x256xf32>
    %cst_12 = arith.constant 1.000000e+00 : f32
    %37 = vector.broadcast %cst_12 : f32 to vector<1x256xf32>
    %38 = arith.subf %36, %37 : vector<1x256xf32>
    %39 = tpu.concatenate %32, %38 in 0 : vector<1x256xf32>, vector<1x256xf32> -> vector<2x256xf32>
    %40 = vector.shape_cast %39 : vector<2x256xf32> to vector<1x2x256xf32>
    %c0_13 = arith.constant 0 : index
    %c4 = arith.constant 4 : index
    %c0_14 = arith.constant 0 : index
    %41 = vector.load %arg3[%c0_13, %c4, %c0_14] : memref<1x6x256xf32, #tpu.memory_space<vmem>>, vector<1x2x256xf32>
    tpu.vector_store %arg3[%c0_13, %c4, %c0_14], %40 {strides = array<i32>} : memref<1x6x256xf32, #tpu.memory_space<vmem>>, vector<1x2x256xf32>,
    return
  }
  func.func @transform_0(%arg0: i32, %arg1: i32) -> (i32, i32, i32) {
    %c0_i32 = arith.constant 0 : i32
    %c0_i32_0 = arith.constant 0 : i32
    return %arg0, %c0_i32, %arg1 : i32, i32, i32
  }
  func.func @transform_1(%arg0: i32, %arg1: i32) -> (i32, i32, i32) {
    %c0_i32 = arith.constant 0 : i32
    %c0_i32_0 = arith.constant 0 : i32
    return %arg0, %c0_i32, %arg1 : i32, i32, i32
  }
}

</mosaic_0001>

<llo_original>
// kernel: tpu_custom_call.1
$region0: #{tpu_custom_call.1}
  #allocation0 [shape = 'u32[]', space=smem, size = 0x4, offset = 0x4, fixed_abs, tag = 'smem constant byte address 0x4 - core index']
  #allocation1 [shape = 'u32[144,128]{1,0:T(1,128)}', space=vmem, size = 0x12000, scoped, tag = 'internal scratch']
  %s0 = inlined_call_operand.hbm [shape: f32[2,4,256], index: 0, kind: input, shape index: {}]
  %s1 = inlined_call_operand.hbm [shape: f32[2,6,256], index: 1, kind: output, shape index: {}]
  %s2 = sld [smem:[#allocation0]]
  $region41: #{tpu_custom_call.1} parent=0
    _
  %s4 = ssub.s32 1, %s2
  %s5 = scalar_select 0, %s4, %s2
  $region1: #{tpu_custom_call.1} parent=0
    #allocation2 [shape = 'u8[8192]{0}', space=vmem, size = 0x2000, scoped, tag = 'input window, operand 0']
    #allocation3 [shape = 's32[2]{0}', space=sflag, size = 0x8, scoped, tag = 'scoped memory for tpu_custom_call.1']
    #allocation4 [shape = 's32[2]{0}', space=sflag, size = 0x8, scoped, tag = 'scoped memory for tpu_custom_call.1']
    #allocation5 [shape = 'u8[16384]{0}', space=vmem, size = 0x4000, scoped, tag = 'output window, operand 0']
    %6 = vsyncpa [#allocation3], 0
    %s7 = scalar_lea.sflag [#allocation3], 1
    %8 = vsyncpa %s7, 0
    %9 = vsyncpa [#allocation4], 0
    %s10 = scalar_lea.sflag [#allocation4], 1
    %11 = vsyncpa %s10, 0
    loop: start=0, step=1, limit=4
    $region2: #{tpu_custom_call.1} parent=1 // loop_pre_header
      _
    $region3: #{tpu_custom_call.1} parent=1 // loop_header
      %s13 = sphi 0, %s17
      %p14 = scmp.ge.s32.totalorder %s13, 4
      %s20 = sphi 0, %s32
      %s21 = sphi 0, %s28
      %s22 = sphi 0, %s20
      %s23 = sphi 0, %s21
      %s24 = sphi 0, %s22
      %s25 = sphi 0, %s23
      %s37 = sphi 0, %s39
      %s40 = sphi 0, %s37
      %s41 = sphi 0, %s40
      %s57 = sphi 0, %s41
      %s65 = sphi 0, %s67
      %s68 = sphi 0, %s65
      %s69 = sphi 0, %s68
      %s85 = sphi 0, %s69
    $region4: #{tpu_custom_call.1} parent=1 // loop_header_branch
      %16 = sbr.rel (%p14) target = $region8
    $region5: #{tpu_custom_call.1} parent=1 // loop_body
      %s18 = ssub.s32 %s13, 1
      %s19 = ssub.s32 %s13, 2
      %s26 = sadd.s32 1, %s21
      %p27 = scmp.ge.s32.totalorder %s26, 1
      %s28 = scalar_select %p27, 0, %s26
      %s29 = sadd.s32 1, %s20
      %s30 = scalar_select %p27, %s29, %s20
      %p31 = scmp.ge.s32.totalorder %s30, 2
      %s32 = scalar_select %p31, 0, %s30
      %s33 = ssub.s32 %s20, %s32
      %s34 = ssub.s32 %s21, %s28
      %s35 = sor.u32 %s33, %s34
      %p36 = scmp.eq.s32.totalorder %s35, 0
      %s38 = sadd.s32 %s37, 1
      %s39 = scalar_select %p36, %s37, %s38
      %p42 = pneg %p36
      %p43 = scmp.eq.s32.totalorder %s13, 1
      %p44 = por %p42, %p43
      %p45 = scmp.ne.s32.totalorder %s37, %s40
      %p46 = scmp.eq.s32.totalorder %s13, 0
      %p47 = por %p45, %p46
      %p48 = scmp.ne.s32.totalorder %s37, %s40
      %p49 = scmp.eq.s32.totalorder %s18, 1
      %p50 = por %p48, %p49
      %p51 = scmp.ne.s32.totalorder %s40, %s41
      %p52 = scmp.eq.s32.totalorder %s18, 0
      %p53 = por %p51, %p52
      %p54 = scmp.ne.s32.totalorder %s40, %s41
      %p55 = scmp.eq.s32.totalorder %s19, 1
      %p56 = por %p54, %p55
      %p58 = scmp.ne.s32.totalorder %s41, %s57
      %p59 = scmp.eq.s32.totalorder %s19, 0
      %p60 = por %p58, %p59
      %s61 = ssub.s32 %s20, %s32
      %s62 = ssub.s32 %s21, %s28
      %s63 = sor.u32 %s61, %s62
      %p64 = scmp.eq.s32.totalorder %s63, 0
      %s66 = sadd.s32 %s65, 1
      %s67 = scalar_select %p64, %s65, %s66
      %p70 = pneg %p64
      %p71 = scmp.eq.s32.totalorder %s13, 1
      %p72 = por %p70, %p71
      %p73 = scmp.ne.s32.totalorder %s65, %s68
      %p74 = scmp.eq.s32.totalorder %s13, 0
      %p75 = por %p73, %p74
      %p76 = scmp.ne.s32.totalorder %s65, %s68
      %p77 = scmp.eq.s32.totalorder %s18, 1
      %p78 = por %p76, %p77
      %p79 = scmp.ne.s32.totalorder %s68, %s69
      %p80 = scmp.eq.s32.totalorder %s18, 0
      %p81 = por %p79, %p80
      %p82 = scmp.ne.s32.totalorder %s68, %s69
      %p83 = scmp.eq.s32.totalorder %s19, 1
      %p84 = por %p82, %p83
      %p86 = scmp.ne.s32.totalorder %s69, %s85
      %p87 = scmp.eq.s32.totalorder %s19, 0
      %p88 = por %p86, %p87
      %p89 = scmp.le.s32.totalorder 1, %s13
      %p90 = scmp.lt.s32.totalorder %s13, 3
      %p91 = pnand %p89, %p90
      %p92 = pneg %p91
      // Predicated region
      $region9: #{tpu_custom_call.1} parent=5 // pred_check
        _
      $region10: #{tpu_custom_call.1} parent=5 // pred_check_branch
        %94 = sbr.rel (%p91) target = $region12
      $region11: #{tpu_custom_call.1} parent=5 // pred_region
        %s95 = ssub.s32 %s13, 1
      $region12: #{tpu_custom_call.1} parent=5 // pred_fallthru
        _
      %p96 = scmp.lt.s32.totalorder %s13, 2
      // Predicated region
      $region13: #{tpu_custom_call.1} parent=5 // pred_check
        %p97 = pneg %p96
      $region14: #{tpu_custom_call.1} parent=5 // pred_check_branch
        %99 = sbr.rel (%p97) target = $region16
      $region15: #{tpu_custom_call.1} parent=5 // pred_region
        // Predicated region
        $region17: #{tpu_custom_call.1} parent=15 // pred_check
          %p100 = pneg %p47
        $region18: #{tpu_custom_call.1} parent=15 // pred_check_branch
          %102 = sbr.rel (%p100) target = $region20
        $region19: #{tpu_custom_call.1} parent=15 // pred_region
          %s103 = sand.u32 %s37, 1
          %s104 = scalar_lea.sflag [#allocation3], %s103
          %s105 = sand.u32 %s37, 1
          %s106 = smul.addr %s105, 8
          %s107 = scalar_lea.vmem [#allocation2], %s106
          %s108 = smul.u32 2, %s21
          %s110 = ssub.s32 128, 128
          %111 = vsyncadd %s104, %s110
          %s112 = smul.addr %s20, 2
          %s113 = sadd.s32 %s108, %s112
          %s114 = smul.addr %s113, 64
          %s115 = scalar_lea.hbm %s0, %s114
          %s117 = sshll.u32 %s107, 4
          %s118 = int_to_ptr.vmem [resolvable:$true] %s117
          %120 = dma.hbm_to_vmem [thread:$0]  %s115, 128, %s118, %s104
        $region20: #{tpu_custom_call.1} parent=15 // pred_fallthru
          _
      $region16: #{tpu_custom_call.1} parent=5 // pred_fallthru
        _
      %p121 = scmp.le.s32.totalorder 1, %s13
      %p122 = scmp.lt.s32.totalorder %s13, 3
      %p123 = pnand %p121, %p122
      %p124 = pneg %p123
      // Predicated region
      $region21: #{tpu_custom_call.1} parent=5 // pred_check
        _
      $region22: #{tpu_custom_call.1} parent=5 // pred_check_branch
        %126 = sbr.rel (%p123) target = $region24
      $region23: #{tpu_custom_call.1} parent=5 // pred_region
        %s127 = ssub.s32 %s13, 1
        %s128 = sand.u32 %s40, 1
        %s129 = scalar_lea.sflag [#allocation3], %s128
        %s130 = sand.u32 %s40, 1
        %s131 = smul.addr %s130, 8
        %s132 = scalar_lea.vmem [#allocation2], %s131
        // Predicated region
        $region25: #{tpu_custom_call.1} parent=23 // pred_check
          %p133 = pneg %p53
        $region26: #{tpu_custom_call.1} parent=23 // pred_check_branch
          %135 = sbr.rel (%p133) target = $region28
        $region27: #{tpu_custom_call.1} parent=23 // pred_region
          %136 = dma.done %s129, 128
        $region28: #{tpu_custom_call.1} parent=23 // pred_fallthru
          _
        %s137 = sand.u32 %s40, 1
        %s138 = scalar_lea.sflag [#allocation3], %s137
        %s139 = sand.u32 %s40, 1
        %s140 = smul.addr %s139, 8
        %s141 = scalar_lea.vmem [#allocation2], %s140
        %p142 = pneg %p53
        %p143 = pneg %p50
        %p144 = pneg %p81
        %p145 = pneg %p78
        %s146 = sand.u32 %s68, 1
        %s147 = scalar_lea.sflag [#allocation4], %s146
        %s148 = sand.u32 %s68, 1
        %s149 = smul.addr %s148, 16
        %s150 = scalar_lea.vmem [#allocation5], %s149
        %s151 = smul.u32 2, %s23
        %s152 = smul.u32 2, %s23
        %v153 = vld [vmem:[%s132] sm:$0xff]
        %v155 = vcombine.high %v153, %v153
        %157 = vst [vmem:[%s150] sm:$0xf] %v153
        %158 = vst [vmem:[%s150 + $0x8] sm:$0xf] %v155
        %s159 = smul.u32 %s23, 256
        %v160 = vlaneseq
        %v161 = vand.u32 %v160, 127
        %v162 = vadd.s32 %v161, 128
        %v163 = vstv %s159
        %v164 = vadd.s32 %v161, %v163
        %v165 = vadd.s32 %v162, %v163
        %v166 = vcvt.s32.f32 %v164
        %v167 = vcvt.s32.f32 %v165
        %v168 = vmul.f32 %v166, 0.0625
        %v169 = vmul.f32 %v167, 0.0625
        %v170 = vfloor.f32 %v168
        %v171 = vfloor.f32 %v169
        %v172 = vcvt.f32.s32.to.zero.pseudo %v170
        %v173 = vcvt.f32.s32.to.zero.pseudo %v171
        %v174 = vmul.u32 %v172, 16
        %v175 = vmul.u32 %v173, 16
        %v176 = vsub.s32 %v164, %v174
        %v177 = vsub.s32 %v165, %v175
        %vm178 = vcmp.ge.s32.totalorder %v176, 16
        %vm179 = vcmp.ge.s32.totalorder %v177, 16
        %v180 = vsel %vm178, 1, 0
        %v181 = vsel %vm179, 1, 0
        %v182 = vadd.s32 %v172, %v180
        %v183 = vadd.s32 %v173, %v181
        %vm184 = vcmp.lt.s32.totalorder %v176, 0
        %vm185 = vcmp.lt.s32.totalorder %v177, 0
        %v186 = vsel %vm184, 1, 0
        %v187 = vsel %vm185, 1, 0
        %v188 = vsub.s32 %v182, %v186
        %v189 = vsub.s32 %v183, %v187
        %v190 = vmul.u32 %v188, 16
        %v191 = vmul.u32 %v189, 16
        %v192 = vsub.s32 %v164, %v190
        %v193 = vsub.s32 %v165, %v191
        %v194 = vcvt.s32.f32 %v188
        %v195 = vcvt.s32.f32 %v189
        %v196 = vcvt.s32.f32 %v192
        %v197 = vcvt.s32.f32 %v193
        %v198 = vrcp.pop 15.0
        %v199 = vmul.f32 %v196, %v198
        %v200 = vmul.f32 %v197, %v198
        %v201 = vmul.f32 %v199, 2.0
        %v202 = vmul.f32 %v200, 2.0
        %v203 = vsub.f32 %v201, 1.0
        %v204 = vsub.f32 %v202, 1.0
        %v205 = vmul.f32 %v194, %v198
        %v206 = vmul.f32 %v195, %v198
        %v207 = vmul.f32 %v205, 2.0
        %v208 = vmul.f32 %v206, 2.0
        %v209 = vsub.f32 %v207, 1.0
        %v210 = vsub.f32 %v208, 1.0
        %vm211 = vcmask 1040384
        %v212 = vsel %vm211, %v203, %v209
        %v213 = vsel %vm211, %v204, %v210
        %v216 = vrot.slane %v212, 4
        %v217 = vrot.slane %v213, 4
        %220 = vst [vmem:[%s150] sm:$0x30] %v216
        %221 = vst [vmem:[%s150 + $0x8] sm:$0x30] %v217
        %s222 = sand.u32 %s68, 1
        %s223 = scalar_lea.sflag [#allocation4], %s222
        %s224 = sand.u32 %s68, 1
        %s225 = smul.addr %s224, 16
        %s226 = scalar_lea.vmem [#allocation5], %s225
        // Predicated region
        $region29: #{tpu_custom_call.1} parent=23 // pred_check
          %p227 = pneg %p78
        $region30: #{tpu_custom_call.1} parent=23 // pred_check_branch
          %229 = sbr.rel (%p227) target = $region32
        $region31: #{tpu_custom_call.1} parent=23 // pred_region
          %s230 = smul.u32 2, %s23
          %s232 = ssub.s32 256, 256
          %233 = vsyncadd %s223, %s232
          %s234 = smul.addr %s22, 2
          %s235 = sadd.s32 %s230, %s234
          %s236 = smul.addr %s235, 128
          %s237 = scalar_lea.hbm %s1, %s236
          %s239 = sshll.u32 %s226, 4
          %s240 = int_to_ptr.vmem [resolvable:$true] %s239
          %242 = dma.vmem_to_hbm [thread:$0]  %s240, 256, %s237, %s223
        $region32: #{tpu_custom_call.1} parent=23 // pred_fallthru
          _
      $region24: #{tpu_custom_call.1} parent=5 // pred_fallthru
        _
      %p243 = scmp.le.s32.totalorder 2, %s13
      // Predicated region
      $region33: #{tpu_custom_call.1} parent=5 // pred_check
        %p244 = pneg %p243
      $region34: #{tpu_custom_call.1} parent=5 // pred_check_branch
        %246 = sbr.rel (%p244) target = $region36
      $region35: #{tpu_custom_call.1} parent=5 // pred_region
        %s247 = ssub.s32 %s13, 2
        // Predicated region
        $region37: #{tpu_custom_call.1} parent=35 // pred_check
          %p248 = pneg %p84
        $region38: #{tpu_custom_call.1} parent=35 // pred_check_branch
          %250 = sbr.rel (%p248) target = $region40
        $region39: #{tpu_custom_call.1} parent=35 // pred_region
          %s251 = sand.u32 %s69, 1
          %s252 = scalar_lea.sflag [#allocation4], %s251
          %s253 = sand.u32 %s69, 1
          %s254 = smul.addr %s253, 16
          %s255 = scalar_lea.vmem [#allocation5], %s254
          %256 = dma.done %s252, 256
        $region40: #{tpu_custom_call.1} parent=35 // pred_fallthru
          _
      $region36: #{tpu_custom_call.1} parent=5 // pred_fallthru
        _
    $region6: #{tpu_custom_call.1} parent=1 // loop_footer
      %s17 = sadd.s32 1, %s13
    $region7: #{tpu_custom_call.1} parent=1 // loop_footer_branch
      %12 = sbr.rel target = $region3
    $region8: #{tpu_custom_call.1} parent=1 // loop_exit
      _
    %257 = vsyncpa [#allocation3], 1
    %s258 = scalar_lea.sflag [#allocation3], 1
    %259 = vsyncpa %s258, 1
    %260 = vsyncpa [#allocation4], 1
    %s261 = scalar_lea.sflag [#allocation4], 1
    %262 = vsyncpa %s261, 1

</llo_original>
